<compile_context>
chip_gen: v6e
topology: v6e:2x2x1
jax: 0.10.0
libtpu: 0.0.40
codegen_flags: <defaults>
</compile_context>

<pallas_src>
import functools

import jax
import jax.numpy as jnp
import numpy as np
from jax import lax
from jax.experimental import pallas as pl
from jax.experimental.pallas import tpu as pltpu


def _cbam_kernel(ws_ref, masks_ref, w1t_ref, w2_ref, x_ref, o_ref, *,
                 W, inv_hw, stage_through_output):
    Bb, C, HWp = x_ref.shape
    Cr = w1t_ref.shape[1]

    xv = x_ref[...]                                        # (Bb, C, HWp), native dtype

    # ---- channel attention: GAP -> 1x1 conv -> ReLU -> 1x1 conv -> sigmoid -------
    # C stays on sublanes throughout (keepdims layout): no lane<->sublane relayout.
    avg_c = jnp.sum(xv, axis=-1, keepdims=True,
                    dtype=jnp.float32) * inv_hw            # (Bb, C, 1); true H*W divisor
    w1t = w1t_ref[...].astype(jnp.float32)                 # (C, Cr) == conv1 weight^T
    w2 = w2_ref[...].astype(jnp.float32)                   # (C, Cr) == conv2 weight
    if Cr >= 8 and Bb >= 8:
        # Realistic CBAM sizes: run the channel MLP on the MXU.
        avg2d = jnp.squeeze(avg_c, axis=-1)                # (Bb, C)
        h = jnp.maximum(
            lax.dot_general(avg2d, w1t, (((1,), (0,)), ((), ())),
                            preferred_element_type=jnp.float32), 0.0)      # (Bb, Cr)
        logit = lax.dot_general(h, w2, (((1,), (1,)), ((), ())),
                                preferred_element_type=jnp.float32)         # (Bb, C)
        att_c = jax.nn.sigmoid(logit)[:, :, None]          # (Bb, C, 1)
    else:
        # Tiny C_r: two broadcast-multiply + reduce passes (VPU + XLU), no MXU.
        h = jnp.maximum(
            jnp.sum(avg_c * w1t[None, :, :], axis=1, keepdims=True), 0.0)   # (Bb, 1, Cr)
        logit = jnp.sum(h * w2[None, :, :], axis=2, keepdims=True)          # (Bb, C, 1)
        att_c = jax.nn.sigmoid(logit)                      # (Bb, C, 1)

    att_c = att_c.astype(xv.dtype)
    if stage_through_output:
        # Large blocks (v7x 64 MiB VMEM): stage x1 through the output block so it is
        # not a second full-size live temporary; costs one extra VMEM round-trip.
        o_ref[...] = (xv * att_c).astype(o_ref.dtype)
        x1 = o_ref[...]
    else:
        x1 = xv * att_c                                    # (Bb, C, HWp)

    # ---- spatial attention: channel mean/max -> 3x3 SAME conv (no bias) -> sigmoid
    avg_s = jnp.mean(x1, axis=1, dtype=jnp.float32)        # (Bb, HWp)
    max_s = jnp.max(x1, axis=1).astype(jnp.float32)        # (Bb, HWp)
    sm = jnp.concatenate([avg_s, max_s], axis=0)           # (2Bb, HWp): avg rows, then max rows

    masks = masks_ref[...]                                 # (9, HWp) per-tap validity, f32
    is_avg = lax.broadcasted_iota(jnp.int32, (2 * Bb, 1), 0) < Bb

    acc = jnp.zeros((2 * Bb, HWp), jnp.float32)
    t = 0
    for si in (-1, 0, 1):                                  # static unrolled 3x3 taps
        for sj in (-1, 0, 1):
            d = si * W + sj                                # flat-index offset of this tap
            shifted = pltpu.roll(sm, (-d) % HWp, axis=1) if d != 0 else sm
            if si != 0 or sj != 0:
                shifted = shifted * masks[t:t + 1, :]      # zero "SAME" padding (+pad cols)
            # avg-map rows get ws[0, di, dj], max-map rows get ws[1, di, dj]
            w_tap = jnp.where(is_avg, ws_ref[t], ws_ref[9 + t])     # (2Bb, 1)
            acc = acc + w_tap * shifted
            t += 1

    att_s = jax.nn.sigmoid(acc[:Bb, :] + acc[Bb:, :])      # (Bb, HWp)
    scale = att_s[:, None, :]
    if stage_through_output:
        o_ref[...] = o_ref[...] * scale.astype(o_ref.dtype)
    else:
        o_ref[...] = (x1 * scale.astype(x1.dtype)).astype(o_ref.dtype)


def _tap_masks(H, W, HWp):
    """Per-tap validity masks for 3x3 SAME zero padding on the flat (padded) HW axis."""
    HW = H * W
    idx = np.arange(HWp)
    rr, cc, valid = idx // W, idx % W, idx < HW
    out = np.zeros((9, HWp), np.float32)
    t = 0
    for si in (-1, 0, 1):
        for sj in (-1, 0, 1):
            m = valid.copy()
            if si == -1:
                m &= rr >= 1
            elif si == 1:
                m &= rr <= H - 2
            if sj == -1:
                m &= cc >= 1
            elif sj == 1:
                m &= cc <= W - 2
            out[t] = m
            t += 1
    return out


def _vmem_capacity_bytes():
    try:
        return int(pltpu.get_tpu_info().vmem_capacity_bytes)
    except Exception:
        return 64 << 20        # assume the smallest (v7x per-TensorCore) if query unavailable


def _auto_batch_block(B, C, HWp, itemsize, vmem_cap):
    # Pipelined footprint per batch row: 2 double-buffered input blocks + 2 output
    # blocks (native dtype) + ~3 full-size f32 temporaries live in the kernel body.
    per_row = C * HWp * (4 * itemsize + 3 * 4)
    budget = vmem_cap // 3                       # headroom for compiler scratch
    bb = int(max(1, min(B, budget // max(per_row, 1))))
    # >= 2 grid steps so both v7x TensorCores get work; >= 4 steps when the batch
    # allows it so BlockSpec double-buffering overlaps HBM DMA with compute.
    target_steps = min(B, 4)
    bb = min(bb, max(1, B // max(target_steps, 1)))
    while B % bb != 0:                           # must divide the batch
        bb -= 1
    return bb


def cbam_forward(x, w1, w2, ws, *, batch_block=None, alias_input=False):
    """CBAM forward. x: (B,C,H,W); w1: (C//r, C); w2: (C, C//r); ws: (2, 3, 3)."""
    B, C, H, W = x.shape
    HW = H * W
    HWp = max(128, ((HW + 127) // 128) * 128)    # lane-dense: pad flat HW to a 128 multiple
    itemsize = jnp.dtype(x.dtype).itemsize

    vmem_cap = _vmem_capacity_bytes()
    Bb = _auto_batch_block(B, C, HWp, itemsize, vmem_cap) if batch_block is None else batch_block
    assert B % Bb == 0, "batch_block must divide batch"

    x2 = x.reshape(B, C, HW)                     # free metadata reshape of contiguous NCHW
    if HWp != HW:
        x2 = jnp.pad(x2, ((0, 0), (0, 0), (0, HWp - HW)))

    ws_flat = ws.reshape(-1).astype(jnp.float32)           # (18,) scalar taps -> SMEM
    w1t = jnp.transpose(w1).astype(jnp.float32)            # (C, Cr): conv1 weight^T
    w2f = w2.astype(jnp.float32)                           # (C, Cr): conv2 weight
    tap_masks = jnp.asarray(_tap_masks(H, W, HWp))         # (9, HWp), built once on host

    block_f32_bytes = Bb * C * HWp * 4
    stage_through_output = block_f32_bytes > (8 << 20)     # only for large blocks (v7x)

    # Explicit VMEM budget: 2x in + 2x out double-buffers + kernel temporaries + slack,
    # instead of the 16/32 MiB scoped defaults.
    block_bytes = Bb * C * HWp * itemsize
    vmem_limit = int(min(vmem_cap,
                         max(4 * block_bytes + 3 * block_f32_bytes + (4 << 20), 32 << 20)))

    kernel = functools.partial(_cbam_kernel, W=W, inv_hw=1.0 / HW,
                               stage_through_output=stage_through_output)
    out = pl.pallas_call(
        kernel,
        out_shape=jax.ShapeDtypeStruct((B, C, HWp), x.dtype),
        grid=(B // Bb,),
        in_specs=[
            pl.BlockSpec(memory_space=pltpu.MemorySpace.SMEM),     # spatial conv taps (18,)
            pl.BlockSpec((9, HWp), lambda i: (0, 0)),              # per-tap validity masks
            pl.BlockSpec((C, w1.shape[0]), lambda i: (0, 0)),      # conv1 weight^T
            pl.BlockSpec((C, w1.shape[0]), lambda i: (0, 0)),      # conv2 weight
            pl.BlockSpec((Bb, C, HWp), lambda i: (i, 0, 0)),       # x (lane-dense)
        ],
        out_specs=pl.BlockSpec((Bb, C, HWp), lambda i: (i, 0, 0)),
        # Aliasing x (input 4) to the output removes the extra HBM allocation, but is
        # only safe when the caller donates its buffer -> opt-in.
        input_output_aliases={4: 0} if alias_input else {},
        compiler_params=pltpu.CompilerParams(
            dimension_semantics=("parallel",),
            vmem_limit_bytes=vmem_limit),
    )(ws_flat, tap_masks, w1t, w2f, x2)

    out = out[..., :HW] if HWp != HW else out
    return out.reshape(B, C, H, W)


def cbam_reference(x, w1, w2, ws):
    # Pure-JAX reference mirroring the PyTorch forward exactly.
    avg = jnp.mean(x, axis=(2, 3))                                 # (B, C)
    h = jnp.maximum(avg @ w1.T, 0.0)                               # (B, Cr)
    att_c = jax.nn.sigmoid(h @ w2.T)                               # (B, C)
    x1 = x * att_c[:, :, None, None]
    avg_s = jnp.mean(x1, axis=1, keepdims=True)                    # (B, 1, H, W)
    max_s = jnp.max(x1, axis=1, keepdims=True)                     # (B, 1, H, W)
    sa_in = jnp.concatenate([avg_s, max_s], axis=1)                # (B, 2, H, W)
    conv = jax.lax.conv_general_dilated(
        sa_in, ws[None], (1, 1), "SAME",
        dimension_numbers=("NCHW", "OIHW", "NCHW"))
    att_s = jax.nn.sigmoid(conv)                                   # (B, 1, H, W)
    return x1 * att_s


if __name__ == "__main__":
    key = jax.random.PRNGKey(0)

    def run_case(B, C, H, W, reduction=16, ksize=3):
        Cr = max(1, C // reduction)
        kx, k1, k2, k3 = jax.random.split(key, 4)
        x = jax.random.normal(kx, (B, C, H, W), dtype=jnp.float32)
        # Deterministic synthetic weights (shapes from nn.Conv2d without bias).
        w1 = jax.random.normal(k1, (Cr, C), dtype=jnp.float32) * 0.1        # 1x1, C -> C/r
        w2 = jax.random.normal(k2, (C, Cr), dtype=jnp.float32) * 0.1        # 1x1, C/r -> C
        ws = jax.random.normal(k3, (2, ksize, ksize), dtype=jnp.float32) * 0.1  # spatial 2 -> 1
        out = jax.block_until_ready(cbam_forward(x, w1, w2, ws))
        ref = cbam_reference(x, w1, w2, ws)
        np.testing.assert_allclose(np.asarray(out), np.asarray(ref), atol=1e-4, rtol=1e-4)

    # Module config: channels=32, reduction=16 (-> hidden 2), kernel_size=3.
    run_case(2, 32, 16, 16)   # HW = 256: already lane-aligned, grid=(2,) -> both v7x TCs
    run_case(2, 32, 14, 14)   # HW = 196: exercises the 128-multiple spatial padding path

    print("KERNEL_OK")
</pallas_src>

<mosaic_0001>
module attributes {stable_mosaic.version = 11 : i64} {
  func.func @_cbam_kernel(%arg0: i32, %arg1: memref<18xf32, #tpu.memory_space<smem>>, %arg2: memref<9x256xf32, #tpu.memory_space<vmem>>, %arg3: memref<32x2xf32, #tpu.memory_space<vmem>>, %arg4: memref<32x2xf32, #tpu.memory_space<vmem>>, %arg5: memref<1x32x256xf32, #tpu.memory_space<vmem>>, %arg6: memref<1x32x256xf32, #tpu.memory_space<vmem>>) attributes {dimension_semantics = [#tpu.dimension_semantics<parallel>], iteration_bounds = array<i64: 2>, scalar_prefetch = 0 : i64, scratch_operands = 0 : i64, tpu.core_type = #tpu.core_type<tc>, window_params = [{transform_indices = @transform_0, window_bounds = array<i64: 18>}, {pipeline_mode = #tpu.pipeline_mode<synchronous>, transform_indices = @transform_1, window_bounds = array<i64: 9, 256>}, {pipeline_mode = #tpu.pipeline_mode<synchronous>, transform_indices = @transform_2, window_bounds = array<i64: 32, 2>}, {pipeline_mode = #tpu.pipeline_mode<synchronous>, transform_indices = @transform_3, window_bounds = array<i64: 32, 2>}, {transform_indices = @transform_4, window_bounds = array<i64: 1, 32, 256>}, {transform_indices = @transform_5, window_bounds = array<i64: 1, 32, 256>}]} {
    %c0 = arith.constant 0 : index
    %c0_0 = arith.constant 0 : index
    %c0_1 = arith.constant 0 : index
    %0 = vector.load %arg5[%c0, %c0_0, %c0_1] : memref<1x32x256xf32, #tpu.memory_space<vmem>>, vector<1x32x256xf32>
    %cst = arith.constant dense<0.000000e+00> : vector<1x32xf32>
    %1 = vector.multi_reduction <add>, %0, %cst [2] : vector<1x32x256xf32> to vector<1x32xf32>
    %2 = vector.shape_cast %1 : vector<1x32xf32> to vector<1x32x1xf32>
    %cst_2 = arith.constant 3.906250e-03 : f32
    %3 = vector.broadcast %cst_2 : f32 to vector<1x32x1xf32>
    %4 = arith.mulf %2, %3 : vector<1x32x1xf32>
    %c0_3 = arith.constant 0 : index
    %c0_4 = arith.constant 0 : index
    %5 = vector.load %arg3[%c0_3, %c0_4] : memref<32x2xf32, #tpu.memory_space<vmem>>, vector<32x2xf32>
    %c0_5 = arith.constant 0 : index
    %c0_6 = arith.constant 0 : index
    %6 = vector.load %arg4[%c0_5, %c0_6] : memref<32x2xf32, #tpu.memory_space<vmem>>, vector<32x2xf32>
    %7 = vector.shape_cast %5 : vector<32x2xf32> to vector<1x32x2xf32>
    %8 = vector.broadcast %4 : vector<1x32x1xf32> to vector<1x32x2xf32>
    %9 = arith.mulf %8, %7 : vector<1x32x2xf32>
    %cst_7 = arith.constant dense<0.000000e+00> : vector<1x2xf32>
    %10 = vector.multi_reduction <add>, %9, %cst_7 [1] : vector<1x32x2xf32> to vector<1x2xf32>
    %11 = vector.shape_cast %10 : vector<1x2xf32> to vector<1x1x2xf32>
    %cst_8 = arith.constant 0.000000e+00 : f32
    %12 = vector.broadcast %cst_8 : f32 to vector<1x1x2xf32>
    %13 = arith.maximumf %11, %12 : vector<1x1x2xf32>
    %14 = vector.shape_cast %6 : vector<32x2xf32> to vector<1x32x2xf32>
    %15 = vector.broadcast %13 : vector<1x1x2xf32> to vector<1x32x2xf32>
    %16 = arith.mulf %15, %14 : vector<1x32x2xf32>
    %cst_9 = arith.constant dense<0.000000e+00> : vector<1x32xf32>
    %17 = vector.multi_reduction <add>, %16, %cst_9 [2] : vector<1x32x2xf32> to vector<1x32xf32>
    %18 = vector.shape_cast %17 : vector<1x32xf32> to vector<1x32x1xf32>
    %19 = arith.negf %18 : vector<1x32x1xf32>
    %20 = math.exp %19 : vector<1x32x1xf32>
    %cst_10 = arith.constant 1.000000e+00 : f32
    %21 = vector.broadcast %cst_10 : f32 to vector<1x32x1xf32>
    %22 = arith.addf %21, %20 : vector<1x32x1xf32>
    %23 = arith.divf %21, %22 : vector<1x32x1xf32>
    %24 = vector.broadcast %23 : vector<1x32x1xf32> to vector<1x32x256xf32>
    %25 = arith.mulf %0, %24 : vector<1x32x256xf32>
    %cst_11 = arith.constant dense<0.000000e+00> : vector<1x256xf32>
    %26 = vector.multi_reduction <add>, %25, %cst_11 [1] : vector<1x32x256xf32> to vector<1x256xf32>
    %cst_12 = arith.constant 3.200000e+01 : f32
    %27 = vector.broadcast %cst_12 : f32 to vector<1x256xf32>
    %28 = arith.divf %26, %27 : vector<1x256xf32>
    %cst_13 = arith.constant dense<0xFF800000> : vector<1x256xf32>
    %29 = vector.multi_reduction <maximumf>, %25, %cst_13 [1] : vector<1x32x256xf32> to vector<1x256xf32>
    %30 = tpu.concatenate %28, %29 in 0 : vector<1x256xf32>, vector<1x256xf32> -> vector<2x256xf32>
    %c0_14 = arith.constant 0 : index
    %c0_15 = arith.constant 0 : index
    %31 = vector.load %arg2[%c0_14, %c0_15] : memref<9x256xf32, #tpu.memory_space<vmem>>, vector<9x256xf32>
    %32 = tpu.iota {dimensions = array<i32: 0>} : vector<2x1xi32>
    %c1_i32 = arith.constant 1 : i32
    %33 = vector.broadcast %c1_i32 : i32 to vector<2x1xi32>
    %34 = arith.cmpi slt, %32, %33 : vector<2x1xi32>
    %cst_16 = arith.constant 0.000000e+00 : f32
    %35 = vector.broadcast %cst_16 : f32 to vector<2x256xf32>
    %c17_i32 = arith.constant 17 : i32
    %36 = tpu.dynamic_rotate %30 by %c17_i32 dim 1 : vector<2x256xf32>, i32 -> vector<2x256xf32>
    %37 = vector.extract_strided_slice %31 {offsets = [0, 0], sizes = [1, 256], strides = [1, 1]} : vector<9x256xf32> to vector<1x256xf32>
    %38 = vector.broadcast %37 : vector<1x256xf32> to vector<2x256xf32>
    %39 = arith.mulf %36, %38 : vector<2x256xf32>
    %c0_17 = arith.constant 0 : index
    %40 = memref.load %arg1[%c0_17] : memref<18xf32, #tpu.memory_space<smem>>
    %c9 = arith.constant 9 : index
    %41 = memref.load %arg1[%c9] : memref<18xf32, #tpu.memory_space<smem>>
    %42 = vector.broadcast %40 : f32 to vector<2x1xf32>
    %43 = vector.broadcast %41 : f32 to vector<2x1xf32>
    %44 = arith.select %34, %42, %43 : vector<2x1xi1>, vector<2x1xf32>
    %45 = vector.broadcast %44 : vector<2x1xf32> to vector<2x256xf32>
    %46 = arith.mulf %45, %39 : vector<2x256xf32>
    %47 = arith.addf %35, %46 : vector<2x256xf32>
    %c16_i32 = arith.constant 16 : i32
    %48 = tpu.dynamic_rotate %30 by %c16_i32 dim 1 : vector<2x256xf32>, i32 -> vector<2x256xf32>
    %49 = vector.extract_strided_slice %31 {offsets = [1, 0], sizes = [1, 256], strides = [1, 1]} : vector<9x256xf32> to vector<1x256xf32>
    %50 = vector.broadcast %49 : vector<1x256xf32> to vector<2x256xf32>
    %51 = arith.mulf %48, %50 : vector<2x256xf32>
    %c1 = arith.constant 1 : index
    %52 = memref.load %arg1[%c1] : memref<18xf32, #tpu.memory_space<smem>>
    %c10 = arith.constant 10 : index
    %53 = memref.load %arg1[%c10] : memref<18xf32, #tpu.memory_space<smem>>
    %54 = vector.broadcast %52 : f32 to vector<2x1xf32>
    %55 = vector.broadcast %53 : f32 to vector<2x1xf32>
    %56 = arith.select %34, %54, %55 : vector<2x1xi1>, vector<2x1xf32>
    %57 = vector.broadcast %56 : vector<2x1xf32> to vector<2x256xf32>
    %58 = arith.mulf %57, %51 : vector<2x256xf32>
    %59 = arith.addf %47, %58 : vector<2x256xf32>
    %c15_i32 = arith.constant 15 : i32
    %60 = tpu.dynamic_rotate %30 by %c15_i32 dim 1 : vector<2x256xf32>, i32 -> vector<2x256xf32>
    %61 = vector.extract_strided_slice %31 {offsets = [2, 0], sizes = [1, 256], strides = [1, 1]} : vector<9x256xf32> to vector<1x256xf32>
    %62 = vector.broadcast %61 : vector<1x256xf32> to vector<2x256xf32>
    %63 = arith.mulf %60, %62 : vector<2x256xf32>
    %c2 = arith.constant 2 : index
    %64 = memref.load %arg1[%c2] : memref<18xf32, #tpu.memory_space<smem>>
    %c11 = arith.constant 11 : index
    %65 = memref.load %arg1[%c11] : memref<18xf32, #tpu.memory_space<smem>>
    %66 = vector.broadcast %64 : f32 to vector<2x1xf32>
    %67 = vector.broadcast %65 : f32 to vector<2x1xf32>
    %68 = arith.select %34, %66, %67 : vector<2x1xi1>, vector<2x1xf32>
    %69 = vector.broadcast %68 : vector<2x1xf32> to vector<2x256xf32>
    %70 = arith.mulf %69, %63 : vector<2x256xf32>
    %71 = arith.addf %59, %70 : vector<2x256xf32>
    %c1_i32_18 = arith.constant 1 : i32
    %72 = tpu.dynamic_rotate %30 by %c1_i32_18 dim 1 : vector<2x256xf32>, i32 -> vector<2x256xf32>
    %73 = vector.extract_strided_slice %31 {offsets = [3, 0], sizes = [1, 256], strides = [1, 1]} : vector<9x256xf32> to vector<1x256xf32>
    %74 = vector.broadcast %73 : vector<1x256xf32> to vector<2x256xf32>
    %75 = arith.mulf %72, %74 : vector<2x256xf32>
    %c3 = arith.constant 3 : index
    %76 = memref.load %arg1[%c3] : memref<18xf32, #tpu.memory_space<smem>>
    %c12 = arith.constant 12 : index
    %77 = memref.load %arg1[%c12] : memref<18xf32, #tpu.memory_space<smem>>
    %78 = vector.broadcast %76 : f32 to vector<2x1xf32>
    %79 = vector.broadcast %77 : f32 to vector<2x1xf32>
    %80 = arith.select %34, %78, %79 : vector<2x1xi1>, vector<2x1xf32>
    %81 = vector.broadcast %80 : vector<2x1xf32> to vector<2x256xf32>
    %82 = arith.mulf %81, %75 : vector<2x256xf32>
    %83 = arith.addf %71, %82 : vector<2x256xf32>
    %c4 = arith.constant 4 : index
    %84 = memref.load %arg1[%c4] : memref<18xf32, #tpu.memory_space<smem>>
    %c13 = arith.constant 13 : index
    %85 = memref.load %arg1[%c13] : memref<18xf32, #tpu.memory_space<smem>>
    %86 = vector.broadcast %84 : f32 to vector<2x1xf32>
    %87 = vector.broadcast %85 : f32 to vector<2x1xf32>
    %88 = arith.select %34, %86, %87 : vector<2x1xi1>, vector<2x1xf32>
    %89 = vector.broadcast %88 : vector<2x1xf32> to vector<2x256xf32>
    %90 = arith.mulf %89, %30 : vector<2x256xf32>
    %91 = arith.addf %83, %90 : vector<2x256xf32>
    %c255_i32 = arith.constant 255 : i32
    %92 = tpu.dynamic_rotate %30 by %c255_i32 dim 1 : vector<2x256xf32>, i32 -> vector<2x256xf32>
    %93 = vector.extract_strided_slice %31 {offsets = [5, 0], sizes = [1, 256], strides = [1, 1]} : vector<9x256xf32> to vector<1x256xf32>
    %94 = vector.broadcast %93 : vector<1x256xf32> to vector<2x256xf32>
    %95 = arith.mulf %92, %94 : vector<2x256xf32>
    %c5 = arith.constant 5 : index
    %96 = memref.load %arg1[%c5] : memref<18xf32, #tpu.memory_space<smem>>
    %c14 = arith.constant 14 : index
    %97 = memref.load %arg1[%c14] : memref<18xf32, #tpu.memory_space<smem>>
    %98 = vector.broadcast %96 : f32 to vector<2x1xf32>
    %99 = vector.broadcast %97 : f32 to vector<2x1xf32>
    %100 = arith.select %34, %98, %99 : vector<2x1xi1>, vector<2x1xf32>
    %101 = vector.broadcast %100 : vector<2x1xf32> to vector<2x256xf32>
    %102 = arith.mulf %101, %95 : vector<2x256xf32>
    %103 = arith.addf %91, %102 : vector<2x256xf32>
    %c241_i32 = arith.constant 241 : i32
    %104 = tpu.dynamic_rotate %30 by %c241_i32 dim 1 : vector<2x256xf32>, i32 -> vector<2x256xf32>
    %105 = vector.extract_strided_slice %31 {offsets = [6, 0], sizes = [1, 256], strides = [1, 1]} : vector<9x256xf32> to vector<1x256xf32>
    %106 = vector.broadcast %105 : vector<1x256xf32> to vector<2x256xf32>
    %107 = arith.mulf %104, %106 : vector<2x256xf32>
    %c6 = arith.constant 6 : index
    %108 = memref.load %arg1[%c6] : memref<18xf32, #tpu.memory_space<smem>>
    %c15 = arith.constant 15 : index
    %109 = memref.load %arg1[%c15] : memref<18xf32, #tpu.memory_space<smem>>
    %110 = vector.broadcast %108 : f32 to vector<2x1xf32>
    %111 = vector.broadcast %109 : f32 to vector<2x1xf32>
    %112 = arith.select %34, %110, %111 : vector<2x1xi1>, vector<2x1xf32>
    %113 = vector.broadcast %112 : vector<2x1xf32> to vector<2x256xf32>
    %114 = arith.mulf %113, %107 : vector<2x256xf32>
    %115 = arith.addf %103, %114 : vector<2x256xf32>
    %c240_i32 = arith.constant 240 : i32
    %116 = tpu.dynamic_rotate %30 by %c240_i32 dim 1 : vector<2x256xf32>, i32 -> vector<2x256xf32>
    %117 = vector.extract_strided_slice %31 {offsets = [7, 0], sizes = [1, 256], strides = [1, 1]} : vector<9x256xf32> to vector<1x256xf32>
    %118 = vector.broadcast %117 : vector<1x256xf32> to vector<2x256xf32>
    %119 = arith.mulf %116, %118 : vector<2x256xf32>
    %c7 = arith.constant 7 : index
    %120 = memref.load %arg1[%c7] : memref<18xf32, #tpu.memory_space<smem>>
    %c16 = arith.constant 16 : index
    %121 = memref.load %arg1[%c16] : memref<18xf32, #tpu.memory_space<smem>>
    %122 = vector.broadcast %120 : f32 to vector<2x1xf32>
    %123 = vector.broadcast %121 : f32 to vector<2x1xf32>
    %124 = arith.select %34, %122, %123 : vector<2x1xi1>, vector<2x1xf32>
    %125 = vector.broadcast %124 : vector<2x1xf32> to vector<2x256xf32>
    %126 = arith.mulf %125, %119 : vector<2x256xf32>
    %127 = arith.addf %115, %126 : vector<2x256xf32>
    %c239_i32 = arith.constant 239 : i32
    %128 = tpu.dynamic_rotate %30 by %c239_i32 dim 1 : vector<2x256xf32>, i32 -> vector<2x256xf32>
    %129 = vector.extract_strided_slice %31 {offsets = [8, 0], sizes = [1, 256], strides = [1, 1]} : vector<9x256xf32> to vector<1x256xf32>
    %130 = vector.broadcast %129 : vector<1x256xf32> to vector<2x256xf32>
    %131 = arith.mulf %128, %130 : vector<2x256xf32>
    %c8 = arith.constant 8 : index
    %132 = memref.load %arg1[%c8] : memref<18xf32, #tpu.memory_space<smem>>
    %c17 = arith.constant 17 : index
    %133 = memref.load %arg1[%c17] : memref<18xf32, #tpu.memory_space<smem>>
    %134 = vector.broadcast %132 : f32 to vector<2x1xf32>
    %135 = vector.broadcast %133 : f32 to vector<2x1xf32>
    %136 = arith.select %34, %134, %135 : vector<2x1xi1>, vector<2x1xf32>
    %137 = vector.broadcast %136 : vector<2x1xf32> to vector<2x256xf32>
    %138 = arith.mulf %137, %131 : vector<2x256xf32>
    %139 = arith.addf %127, %138 : vector<2x256xf32>
    %140 = vector.extract_strided_slice %139 {offsets = [0, 0], sizes = [1, 256], strides = [1, 1]} : vector<2x256xf32> to vector<1x256xf32>
    %141 = vector.extract_strided_slice %139 {offsets = [1, 0], sizes = [1, 256], strides = [1, 1]} : vector<2x256xf32> to vector<1x256xf32>
    %142 = arith.addf %140, %141 : vector<1x256xf32>
    %143 = arith.negf %142 : vector<1x256xf32>
    %144 = math.exp %143 : vector<1x256xf32>
    %cst_19 = arith.constant 1.000000e+00 : f32
    %145 = vector.broadcast %cst_19 : f32 to vector<1x256xf32>
    %146 = arith.addf %145, %144 : vector<1x256xf32>
    %147 = arith.divf %145, %146 : vector<1x256xf32>
    %148 = vector.shape_cast %147 : vector<1x256xf32> to vector<1x1x256xf32>
    %149 = vector.broadcast %148 : vector<1x1x256xf32> to vector<1x32x256xf32>
    %150 = arith.mulf %25, %149 : vector<1x32x256xf32>
    %c0_20 = arith.constant 0 : index
    %c0_21 = arith.constant 0 : index
    %c0_22 = arith.constant 0 : index
    %151 = vector.load %arg6[%c0_20, %c0_21, %c0_22] : memref<1x32x256xf32, #tpu.memory_space<vmem>>, vector<1x32x256xf32>
    tpu.vector_store %arg6[%c0_20, %c0_21, %c0_22], %150 {strides = array<i32>} : memref<1x32x256xf32, #tpu.memory_space<vmem>>, vector<1x32x256xf32>,
    return
  }
  func.func @transform_0(%arg0: i32) -> i32 {
    %c0_i32 = arith.constant 0 : i32
    %c0_i32_0 = arith.constant 0 : i32
    return %c0_i32 : i32
  }
  func.func @transform_1(%arg0: i32) -> (i32, i32) {
    %c0_i32 = arith.constant 0 : i32
    %c0_i32_0 = arith.constant 0 : i32
    %c0_i32_1 = arith.constant 0 : i32
    return %c0_i32, %c0_i32_0 : i32, i32
  }
  func.func @transform_2(%arg0: i32) -> (i32, i32) {
    %c0_i32 = arith.constant 0 : i32
    %c0_i32_0 = arith.constant 0 : i32
    %c0_i32_1 = arith.constant 0 : i32
    return %c0_i32, %c0_i32_0 : i32, i32
  }
  func.func @transform_3(%arg0: i32) -> (i32, i32) {
    %c0_i32 = arith.constant 0 : i32
    %c0_i32_0 = arith.constant 0 : i32
    %c0_i32_1 = arith.constant 0 : i32
    return %c0_i32, %c0_i32_0 : i32, i32
  }
  func.func @transform_4(%arg0: i32) -> (i32, i32, i32) {
    %c0_i32 = arith.constant 0 : i32
    %c0_i32_0 = arith.constant 0 : i32
    %c0_i32_1 = arith.constant 0 : i32
    return %arg0, %c0_i32, %c0_i32_0 : i32, i32, i32
  }
  func.func @transform_5(%arg0: i32) -> (i32, i32, i32) {
    %c0_i32 = arith.constant 0 : i32
    %c0_i32_0 = arith.constant 0 : i32
    %c0_i32_1 = arith.constant 0 : i32
    return %arg0, %c0_i32, %c0_i32_0 : i32, i32, i32
  }
}

</mosaic_0001>

<llo_original>
// kernel: tpu_custom_call.1
$region0: #{tpu_custom_call.1}
  #allocation0 [shape = 'u32[]', space=smem, size = 0x4, offset = 0x4, fixed_abs, tag = 'smem constant byte address 0x4 - core index']
  #allocation1 [shape = 'u32[144,128]{1,0:T(1,128)}', space=vmem, size = 0x12000, scoped, tag = 'internal scratch']
  %s0 = inlined_call_operand.vmem [shape: f32[18], index: 0, kind: input, shape index: {}]
  %s1 = inlined_call_operand.vmem [shape: f32[9,256], index: 1, kind: input, shape index: {}]
  %s2 = inlined_call_operand.vmem [shape: f32[32,2], index: 2, kind: input, shape index: {}]
  %s3 = inlined_call_operand.vmem [shape: f32[32,2], index: 3, kind: input, shape index: {}]
  %s4 = inlined_call_operand.hbm [shape: f32[2,32,256], index: 4, kind: input, shape index: {}]
  %s5 = inlined_call_operand.hbm [shape: f32[2,32,256], index: 5, kind: output, shape index: {}]
  %s6 = sld [smem:[#allocation0]]
  $region61: #{tpu_custom_call.1} parent=0
    _
  %s8 = ssub.s32 1, %s6
  %s9 = scalar_select 0, %s8, %s6
  $region1: #{tpu_custom_call.1} parent=0
    #allocation2 [shape = 'u8[512]{0}', space=smem, size = 0x200, scoped, tag = 'input window, operand 0, single buffered']
    #allocation3 [shape = 's32[2]{0}', space=sflag, size = 0x8, scoped, tag = 'scoped memory for tpu_custom_call.1']
    #allocation4 [shape = 's32[2]{0}', space=sflag, size = 0x8, scoped, tag = 'scoped memory for tpu_custom_call.1']
    #allocation5 [shape = 's32[2]{0}', space=sflag, size = 0x8, scoped, tag = 'scoped memory for tpu_custom_call.1']
    #allocation6 [shape = 'u8[65536]{0}', space=vmem, size = 0x10000, scoped, tag = 'input window, operand 4']
    #allocation7 [shape = 'u8[65536]{0}', space=vmem, size = 0x10000, scoped, tag = 'output window, operand 0']
    %10 = vsyncpa [#allocation5], 0
    %11 = vsyncpa [#allocation3], 0
    %s12 = scalar_lea.sflag [#allocation3], 1
    %13 = vsyncpa %s12, 0
    %14 = vsyncpa [#allocation4], 0
    %s15 = scalar_lea.sflag [#allocation4], 1
    %16 = vsyncpa %s15, 0
    loop: start=0, step=1, limit=4
    $region2: #{tpu_custom_call.1} parent=1 // loop_pre_header
      _
    $region3: #{tpu_custom_call.1} parent=1 // loop_header
      %s18 = sphi 0, %s22
      %p19 = scmp.ge.s32.totalorder %s18, 4
      %s26 = sphi 0, %s26
      %s28 = sphi 0, %s26
      %s29 = sphi 0, %s28
      %s43 = sphi 0, %s29
      %s47 = sphi 0, %s47
      %s49 = sphi 0, %s47
      %s50 = sphi 0, %s49
      %s64 = sphi 0, %s50
      %s68 = sphi 0, %s68
      %s70 = sphi 0, %s68
      %s71 = sphi 0, %s70
      %s85 = sphi 0, %s71
      %s89 = sphi 0, %s89
      %s91 = sphi 0, %s89
      %s92 = sphi 0, %s91
      %s106 = sphi 0, %s92
      %s112 = sphi 0, %s114
      %s115 = sphi 0, %s112
      %s116 = sphi 0, %s115
      %s132 = sphi 0, %s116
      %s138 = sphi 0, %s140
      %s141 = sphi 0, %s138
      %s142 = sphi 0, %s141
      %s158 = sphi 0, %s142
    $region4: #{tpu_custom_call.1} parent=1 // loop_header_branch
      %21 = sbr.rel (%p19) target = $region8
    $region5: #{tpu_custom_call.1} parent=1 // loop_body
      %s23 = ssub.s32 %s18, 1
      %s24 = ssub.s32 %s18, 2
      %s25 = sadd.s32 %s18, 1
      %s27 = sadd.s32 %s26, 1
      %p30 = scmp.eq.s32.totalorder %s18, 1
      %p31 = scmp.ne.s32.totalorder %s26, %s28
      %p32 = scmp.eq.s32.totalorder %s18, 0
      %p33 = por %p31, %p32
      %p34 = scmp.ne.s32.totalorder %s26, %s28
      %p35 = scmp.eq.s32.totalorder %s23, 1
      %p36 = por %p34, %p35
      %p37 = scmp.ne.s32.totalorder %s28, %s29
      %p38 = scmp.eq.s32.totalorder %s23, 0
      %p39 = por %p37, %p38
      %p40 = scmp.ne.s32.totalorder %s28, %s29
      %p41 = scmp.eq.s32.totalorder %s24, 1
      %p42 = por %p40, %p41
      %p44 = scmp.ne.s32.totalorder %s29, %s43
      %p45 = scmp.eq.s32.totalorder %s24, 0
      %p46 = por %p44, %p45
      %s48 = sadd.s32 %s47, 1
      %p51 = scmp.eq.s32.totalorder %s18, 1
      %p52 = scmp.ne.s32.totalorder %s47, %s49
      %p53 = scmp.eq.s32.totalorder %s18, 0
      %p54 = por %p52, %p53
      %p55 = scmp.ne.s32.totalorder %s47, %s49
      %p56 = scmp.eq.s32.totalorder %s23, 1
      %p57 = por %p55, %p56
      %p58 = scmp.ne.s32.totalorder %s49, %s50
      %p59 = scmp.eq.s32.totalorder %s23, 0
      %p60 = por %p58, %p59
      %p61 = scmp.ne.s32.totalorder %s49, %s50
      %p62 = scmp.eq.s32.totalorder %s24, 1
      %p63 = por %p61, %p62
      %p65 = scmp.ne.s32.totalorder %s50, %s64
      %p66 = scmp.eq.s32.totalorder %s24, 0
      %p67 = por %p65, %p66
      %s69 = sadd.s32 %s68, 1
      %p72 = scmp.eq.s32.totalorder %s18, 1
      %p73 = scmp.ne.s32.totalorder %s68, %s70
      %p74 = scmp.eq.s32.totalorder %s18, 0
      %p75 = por %p73, %p74
      %p76 = scmp.ne.s32.totalorder %s68, %s70
      %p77 = scmp.eq.s32.totalorder %s23, 1
      %p78 = por %p76, %p77
      %p79 = scmp.ne.s32.totalorder %s70, %s71
      %p80 = scmp.eq.s32.totalorder %s23, 0
      %p81 = por %p79, %p80
      %p82 = scmp.ne.s32.totalorder %s70, %s71
      %p83 = scmp.eq.s32.totalorder %s24, 1
      %p84 = por %p82, %p83
      %p86 = scmp.ne.s32.totalorder %s71, %s85
      %p87 = scmp.eq.s32.totalorder %s24, 0
      %p88 = por %p86, %p87
      %s90 = sadd.s32 %s89, 1
      %p93 = scmp.eq.s32.totalorder %s18, 1
      %p94 = scmp.ne.s32.totalorder %s89, %s91
      %p95 = scmp.eq.s32.totalorder %s18, 0
      %p96 = por %p94, %p95
      %p97 = scmp.ne.s32.totalorder %s89, %s91
      %p98 = scmp.eq.s32.totalorder %s23, 1
      %p99 = por %p97, %p98
      %p100 = scmp.ne.s32.totalorder %s91, %s92
      %p101 = scmp.eq.s32.totalorder %s23, 0
      %p102 = por %p100, %p101
      %p103 = scmp.ne.s32.totalorder %s91, %s92
      %p104 = scmp.eq.s32.totalorder %s24, 1
      %p105 = por %p103, %p104
      %p107 = scmp.ne.s32.totalorder %s92, %s106
      %p108 = scmp.eq.s32.totalorder %s24, 0
      %p109 = por %p107, %p108
      %s110 = ssub.s32 %s18, %s25
      %p111 = scmp.eq.s32.totalorder %s110, 0
      %s113 = sadd.s32 %s112, 1
      %s114 = scalar_select %p111, %s112, %s113
      %p117 = pneg %p111
      %p118 = scmp.eq.s32.totalorder %s18, 1
      %p119 = por %p117, %p118
      %p120 = scmp.ne.s32.totalorder %s112, %s115
      %p121 = scmp.eq.s32.totalorder %s18, 0
      %p122 = por %p120, %p121
      %p123 = scmp.ne.s32.totalorder %s112, %s115
      %p124 = scmp.eq.s32.totalorder %s23, 1
      %p125 = por %p123, %p124
      %p126 = scmp.ne.s32.totalorder %s115, %s116
      %p127 = scmp.eq.s32.totalorder %s23, 0
      %p128 = por %p126, %p127
      %p129 = scmp.ne.s32.totalorder %s115, %s116
      %p130 = scmp.eq.s32.totalorder %s24, 1
      %p131 = por %p129, %p130
      %p133 = scmp.ne.s32.totalorder %s116, %s132
      %p134 = scmp.eq.s32.totalorder %s24, 0
      %p135 = por %p133, %p134
      %s136 = ssub.s32 %s18, %s25
      %p137 = scmp.eq.s32.totalorder %s136, 0
      %s139 = sadd.s32 %s138, 1
      %s140 = scalar_select %p137, %s138, %s139
      %p143 = pneg %p137
      %p144 = scmp.eq.s32.totalorder %s18, 1
      %p145 = por %p143, %p144
      %p146 = scmp.ne.s32.totalorder %s138, %s141
      %p147 = scmp.eq.s32.totalorder %s18, 0
      %p148 = por %p146, %p147
      %p149 = scmp.ne.s32.totalorder %s138, %s141
      %p150 = scmp.eq.s32.totalorder %s23, 1
      %p151 = por %p149, %p150
      %p152 = scmp.ne.s32.totalorder %s141, %s142
      %p153 = scmp.eq.s32.totalorder %s23, 0
      %p154 = por %p152, %p153
      %p155 = scmp.ne.s32.totalorder %s141, %s142
      %p156 = scmp.eq.s32.totalorder %s24, 1
      %p157 = por %p155, %p156
      %p159 = scmp.ne.s32.totalorder %s142, %s158
      %p160 = scmp.eq.s32.totalorder %s24, 0
      %p161 = por %p159, %p160
      %p162 = scmp.le.s32.totalorder 1, %s18
      %p163 = scmp.lt.s32.totalorder %s18, 3
      %p164 = pnand %p162, %p163
      %p165 = pneg %p164
      // Predicated region
      $region9: #{tpu_custom_call.1} parent=5 // pred_check
        _
      $region10: #{tpu_custom_call.1} parent=5 // pred_check_branch
        %167 = sbr.rel (%p164) target = $region12
      $region11: #{tpu_custom_call.1} parent=5 // pred_region
        %s168 = ssub.s32 %s18, 1
        // Predicated region
        $region13: #{tpu_custom_call.1} parent=11 // pred_check
          %p169 = pneg %p39
        $region14: #{tpu_custom_call.1} parent=11 // pred_check_branch
          %171 = sbr.rel (%p169) target = $region16
        $region15: #{tpu_custom_call.1} parent=11 // pred_region
          %s173 = ssub.s32 16, 16
          %174 = vsyncadd [#allocation5], %s173
          %s176 = sshll.u32 %s0, 4
          %s177 = int_to_ptr.vmem [resolvable:$true] %s176
          %179 = dma.vmem_to_smem %s177, 16, [#allocation2], [#allocation5]
        $region16: #{tpu_custom_call.1} parent=11 // pred_fallthru
          _
        // Predicated region
        $region17: #{tpu_custom_call.1} parent=11 // pred_check
          %p180 = pneg %p60
        $region18: #{tpu_custom_call.1} parent=11 // pred_check_branch
          %182 = sbr.rel (%p180) target = $region20
        $region19: #{tpu_custom_call.1} parent=11 // pred_region
          _
        $region20: #{tpu_custom_call.1} parent=11 // pred_fallthru
          _
        // Predicated region
        $region21: #{tpu_custom_call.1} parent=11 // pred_check
          %p183 = pneg %p81
        $region22: #{tpu_custom_call.1} parent=11 // pred_check_branch
          %185 = sbr.rel (%p183) target = $region24
        $region23: #{tpu_custom_call.1} parent=11 // pred_region
          _
        $region24: #{tpu_custom_call.1} parent=11 // pred_fallthru
          _
        // Predicated region
        $region25: #{tpu_custom_call.1} parent=11 // pred_check
          %p186 = pneg %p102
        $region26: #{tpu_custom_call.1} parent=11 // pred_check_branch
          %188 = sbr.rel (%p186) target = $region28
        $region27: #{tpu_custom_call.1} parent=11 // pred_region
          _
        $region28: #{tpu_custom_call.1} parent=11 // pred_fallthru
          _
      $region12: #{tpu_custom_call.1} parent=5 // pred_fallthru
        _
      %p189 = scmp.lt.s32.totalorder %s18, 2
      // Predicated region
      $region29: #{tpu_custom_call.1} parent=5 // pred_check
        %p190 = pneg %p189
      $region30: #{tpu_custom_call.1} parent=5 // pred_check_branch
        %192 = sbr.rel (%p190) target = $region32
      $region31: #{tpu_custom_call.1} parent=5 // pred_region
        // Predicated region
        $region33: #{tpu_custom_call.1} parent=31 // pred_check
          %p193 = pneg %p122
        $region34: #{tpu_custom_call.1} parent=31 // pred_check_branch
          %195 = sbr.rel (%p193) target = $region36
        $region35: #{tpu_custom_call.1} parent=31 // pred_region
          %s196 = sand.u32 %s112, 1
          %s197 = scalar_lea.sflag [#allocation3], %s196
          %s198 = sand.u32 %s112, 1
          %s199 = smul.addr %s198, 64
          %s200 = scalar_lea.vmem [#allocation6], %s199
          %s202 = ssub.s32 1024, 1024
          %203 = vsyncadd %s197, %s202
          %s204 = smul.addr %s18, 8
          %s205 = smul.addr %s204, 128
          %s206 = scalar_lea.hbm %s4, %s205
          %s207 = sshll.u32 %s200, 4
          %s208 = int_to_ptr.vmem [resolvable:$true] %s207
          %213 = dma.hbm_to_vmem [thread:$0]  %s206, 1024, %s208, %s197, 256, 256, 16
        $region36: #{tpu_custom_call.1} parent=31 // pred_fallthru
          _
      $region32: #{tpu_custom_call.1} parent=5 // pred_fallthru
        _
      %p214 = scmp.le.s32.totalorder 1, %s18
      %p215 = scmp.lt.s32.totalorder %s18, 3
      %p216 = pnand %p214, %p215
      %p217 = pneg %p216
      // Predicated region
      $region37: #{tpu_custom_call.1} parent=5 // pred_check
        _
      $region38: #{tpu_custom_call.1} parent=5 // pred_check_branch
        %219 = sbr.rel (%p216) target = $region40
      $region39: #{tpu_custom_call.1} parent=5 // pred_region
        %s220 = ssub.s32 %s18, 1
        // Predicated region
        $region41: #{tpu_custom_call.1} parent=39 // pred_check
          %p221 = pneg %p39
        $region42: #{tpu_custom_call.1} parent=39 // pred_check_branch
          %223 = sbr.rel (%p221) target = $region44
        $region43: #{tpu_custom_call.1} parent=39 // pred_region
          %224 = dma.done [#allocation5], 16
        $region44: #{tpu_custom_call.1} parent=39 // pred_fallthru
          _
        %s225 = sand.u32 %s115, 1
        %s226 = scalar_lea.sflag [#allocation3], %s225
        %s227 = sand.u32 %s115, 1
        %s228 = smul.addr %s227, 64
        %s229 = scalar_lea.vmem [#allocation6], %s228
        // Predicated region
        $region45: #{tpu_custom_call.1} parent=39 // pred_check
          %p230 = pneg %p128
        $region46: #{tpu_custom_call.1} parent=39 // pred_check_branch
          %232 = sbr.rel (%p230) target = $region48
        $region47: #{tpu_custom_call.1} parent=39 // pred_region
          %233 = dma.done %s226, 1024
        $region48: #{tpu_custom_call.1} parent=39 // pred_fallthru
          _
        %234 = sfence
        %p235 = pneg %p39
        %p236 = pneg %p36
        %p237 = pneg %p60
        %p238 = pneg %p57
        %p239 = pneg %p81
        %p240 = pneg %p78
        %p241 = pneg %p102
        %p242 = pneg %p99
        %s243 = sand.u32 %s115, 1
        %s244 = scalar_lea.sflag [#allocation3], %s243
        %s245 = sand.u32 %s115, 1
        %s246 = smul.addr %s245, 64
        %s247 = scalar_lea.vmem [#allocation6], %s246
        %p248 = pneg %p128
        %p249 = pneg %p125
        %p250 = pneg %p154
        %p251 = pneg %p151
        %s252 = sand.u32 %s141, 1
        %s253 = scalar_lea.sflag [#allocation4], %s252
        %s254 = sand.u32 %s141, 1
        %s255 = smul.addr %s254, 64
        %s256 = scalar_lea.vmem [#allocation7], %s255
        %v257 = vld [vmem:[%s229] sm:$0xff]
        %v258 = vld [vmem:[%s229 + $0x8] sm:$0xff]
        %v259 = vld [vmem:[%s229 + $0x10] sm:$0xff]
        %v260 = vld [vmem:[%s229 + $0x18] sm:$0xff]
        %v261 = vld [vmem:[%s229 + $0x20] sm:$0xff]
        %v262 = vld [vmem:[%s229 + $0x28] sm:$0xff]
        %v263 = vld [vmem:[%s229 + $0x30] sm:$0xff]
        %v264 = vld [vmem:[%s229 + $0x38] sm:$0xff]
        %v265 = vadd.f32 %v257, %v258
        %266 = vadd.xlane.f32.xlu0 %v265
        %v267 = vpop.xlane.xlu0 %266
        %v268 = vadd.f32 %v259, %v260
        %269 = vadd.xlane.f32.xlu0 %v268
        %v270 = vpop.xlane.xlu0 %269
        %v271 = vadd.f32 %v261, %v262
        %272 = vadd.xlane.f32.xlu0 %v271
        %v273 = vpop.xlane.xlu0 %272
        %v274 = vadd.f32 %v263, %v264
        %275 = vadd.xlane.f32.xlu0 %v274
        %v276 = vpop.xlane.xlu0 %275
        %v277 = vmul.f32 %v267, 0.00390625
        %v278 = vmul.f32 %v270, 0.00390625
        %v279 = vmul.f32 %v273, 0.00390625
        %v280 = vmul.f32 %v276, 0.00390625
        %v281 = vld [vmem:[%s2] sm:$0xff]
        %v282 = vld [vmem:[%s2 + $0x8] sm:$0xff]
        %v283 = vld [vmem:[%s2 + $0x10] sm:$0xff]
        %v284 = vld [vmem:[%s2 + $0x18] sm:$0xff]
        %v285 = vld [vmem:[%s3] sm:$0xff]
        %v286 = vld [vmem:[%s3 + $0x8] sm:$0xff]
        %v287 = vld [vmem:[%s3 + $0x10] sm:$0xff]
        %v288 = vld [vmem:[%s3 + $0x18] sm:$0xff]
        %v289 = vmul.f32 %v277, %v281
        %v290 = vmul.f32 %v278, %v282
        %v291 = vmul.f32 %v279, %v283
        %v292 = vmul.f32 %v280, %v284
        %vm293 = vcmask 15360
        %v294 = vsel %vm293, %v289, 0.0
        %v295 = vsel %vm293, %v290, 0.0
        %v296 = vadd.f32 %v294, %v295
        %v297 = vsel %vm293, %v291, 0.0
        %v298 = vadd.f32 %v296, %v297
        %v299 = vsel %vm293, %v292, 0.0
        %v300 = vadd.f32 %v298, %v299
        %v301 = vrot.slane %v300, 4
        %v302 = vadd.f32 %v300, %v301
        %v303 = vrot.slane %v302, 2
        %v304 = vadd.f32 %v302, %v303
        %v305 = vrot.slane %v304, 1
        %v306 = vadd.f32 %v304, %v305
        %v307 = vmax.f32 %v306, 0.0
        %v308 = vmul.f32 %v307, %v285
        %v309 = vmul.f32 %v307, %v286
        %v310 = vmul.f32 %v307, %v287
        %v311 = vmul.f32 %v307, %v288
        %v312 = vsel %vm293, %v308, 0.0
        %313 = vadd.xlane.f32.xlu0 %v312
        %v314 = vpop.xlane.xlu0 %313
        %v315 = vsel %vm293, %v309, 0.0
        %316 = vadd.xlane.f32.xlu0 %v315
        %v317 = vpop.xlane.xlu0 %316
        %v318 = vsel %vm293, %v310, 0.0
        %319 = vadd.xlane.f32.xlu0 %v318
        %v320 = vpop.xlane.xlu0 %319
        %v321 = vsel %vm293, %v311, 0.0
        %322 = vadd.xlane.f32.xlu0 %v321
        %v323 = vpop.xlane.xlu0 %322
        %v324 = vxor.u32 %v314, 2147483648
        %v325 = vxor.u32 %v317, 2147483648
        %v326 = vxor.u32 %v320, 2147483648
        %v327 = vxor.u32 %v323, 2147483648
        %v328 = vmul.f32 %v324, 1.442695
        %v329 = vpow.pop %v328
        %v330 = vmul.f32 %v325, 1.442695
        %v331 = vpow.pop %v330
        %v332 = vmul.f32 %v326, 1.442695
        %v333 = vpow.pop %v332
        %v334 = vmul.f32 %v327, 1.442695
        %v335 = vpow.pop %v334
        %v336 = vadd.f32 %v329, 1.0
        %v337 = vadd.f32 %v331, 1.0
        %v338 = vadd.f32 %v333, 1.0
        %v339 = vadd.f32 %v335, 1.0
        %v340 = vrcp.pop %v336
        %v341 = vmul.f32 1.0, %v340
        %v342 = vrcp.pop %v337
        %v343 = vmul.f32 1.0, %v342
        %v344 = vrcp.pop %v338
        %v345 = vmul.f32 1.0, %v344
        %v346 = vrcp.pop %v339
        %v347 = vmul.f32 1.0, %v346
        %v348 = vmul.f32 %v257, %v341
        %v349 = vmul.f32 %v258, %v341
        %v350 = vmul.f32 %v259, %v343
        %v351 = vmul.f32 %v260, %v343
        %v352 = vmul.f32 %v261, %v345
        %v353 = vmul.f32 %v262, %v345
        %v354 = vmul.f32 %v263, %v347
        %v355 = vmul.f32 %v264, %v347
        %v356 = vadd.f32 %v348, %v350
        %v357 = vadd.f32 %v356, %v352
        %v358 = vadd.f32 %v357, %v354
        %v359 = vrot.slane %v358, 4
        %v360 = vadd.f32 %v358, %v359
        %v361 = vrot.slane %v360, 2
        %v362 = vadd.f32 %v360, %v361
        %v363 = vrot.slane %v362, 1
        %v364 = vadd.f32 %v362, %v363
        %v365 = vadd.f32 %v349, %v351
        %v366 = vadd.f32 %v365, %v353
        %v367 = vadd.f32 %v366, %v355
        %v368 = vrot.slane %v367, 4
        %v369 = vadd.f32 %v367, %v368
        %v370 = vrot.slane %v369, 2
        %v371 = vadd.f32 %v369, %v370
        %v372 = vrot.slane %v371, 1
        %v373 = vadd.f32 %v371, %v372
        %v374 = vrcp.pop 32.0
        %v375 = vmul.f32 %v364, %v374
        %v376 = vmul.f32 %v373, %v374
        %v377 = vmax.f32 %v348, %v352
        %v378 = vmax.f32 %v350, %v354
        %v379 = vmax.f32 %v377, %v378
        %v380 = vrot.slane %v379, 4
        %v381 = vmax.f32 %v379, %v380
        %v382 = vrot.slane %v381, 2
        %v383 = vmax.f32 %v381, %v382
        %v384 = vrot.slane %v383, 1
        %v385 = vmax.f32 %v383, %v384
        %v386 = vmax.f32 %v349, %v353
        %v387 = vmax.f32 %v351, %v355
        %v388 = vmax.f32 %v386, %v387
        %v389 = vrot.slane %v388, 4
        %v390 = vmax.f32 %v388, %v389
        %v391 = vrot.slane %v390, 2
        %v392 = vmax.f32 %v390, %v391
        %v393 = vrot.slane %v392, 1
        %v394 = vmax.f32 %v392, %v393
        %vm395 = vcmask 1040384
        %v396 = vsel %vm395, %v375, %v385
        %v397 = vsel %vm395, %v376, %v394
        %v398 = vld [vmem:[%s1] sm:$0xff]
        %v399 = vld [vmem:[%s1 + $0x8] sm:$0xff]
        %v400 = vld [vmem:[%s1 + $0x10] sm:$0x1]
        %v401 = vld [vmem:[%s1 + $0x18] sm:$0x1]
        %v402 = vlaneseq
        %v403 = vshrl.u32 %v402, 7
        %vm404 = vcmp.lt.s32.totalorder %v403, 1
        %405 = vrot.lane.b32.xlu0 %v396, 17
        %v406 = vpop.permute.xlu0 %405
        %407 = vrot.lane.b32.xlu0 %v397, 17
        %v408 = vpop.permute.xlu0 %407
        %v409 = vlaneseq
        %v410 = vand.u32 %v409, 127
        %vm411 = vcmp.lt.s32.totalorder %v410, 17
        %v412 = vsel %vm411, %v406, %v408
        %v413 = vsel %vm411, %v408, %v406
        %v414 = vlaneseq
        %v415 = vshrl.u32 %v414, 7
        %v416 = vsub.s32 0, %v415
        %v417 = vrot.slane %v398, %v416
        %v418 = vlaneseq
        %v419 = vshrl.u32 %v418, 7
        %v420 = vsub.s32 0, %v419
        %v421 = vrot.slane %v399, %v420
        %v422 = vmul.f32 %v413, %v417
        %v423 = vmul.f32 %v412, %v421
        %s424 = sld [smem:[#allocation2]]
        %s425 = sld [smem:[#allocation2 + $0x9]]
        %v426 = vstv %s424
        %v427 = vstv %s425
        %v428 = vsel %vm404, %v426, %v427
        %v429 = vmul.f32 %v428, %v422
        %v430 = vmul.f32 %v428, %v423
        %v431 = vadd.f32 %v429, 0.0
        %v432 = vadd.f32 %v430, 0.0
        %433 = vrot.lane.b32.xlu0 %v396, 16
        %v434 = vpop.permute.xlu0 %433
        %435 = vrot.lane.b32.xlu0 %v397, 16
        %v436 = vpop.permute.xlu0 %435
        %vm437 = vcmp.lt.s32.totalorder %v410, 16
        %v438 = vsel %vm437, %v434, %v436
        %v439 = vsel %vm437, %v436, %v434
        %v440 = vlaneseq
        %v441 = vshrl.u32 %v440, 7
        %v442 = vsub.s32 1, %v441
        %v443 = vrot.slane %v398, %v442
        %v444 = vlaneseq
        %v445 = vshrl.u32 %v444, 7
        %v446 = vsub.s32 1, %v445
        %v447 = vrot.slane %v399, %v446
        %v448 = vmul.f32 %v439, %v443
        %v449 = vmul.f32 %v438, %v447
        %s450 = sld [smem:[#allocation2 + $0x1]]
        %s451 = sld [smem:[#allocation2 + $0xa]]
        %v452 = vstv %s450
        %v453 = vstv %s451
        %v454 = vsel %vm404, %v452, %v453
        %v455 = vmul.f32 %v454, %v448
        %v456 = vmul.f32 %v454, %v449
        %v457 = vadd.f32 %v431, %v455
        %v458 = vadd.f32 %v432, %v456
        %459 = vrot.lane.b32.xlu0 %v396, 15
        %v460 = vpop.permute.xlu0 %459
        %461 = vrot.lane.b32.xlu0 %v397, 15
        %v462 = vpop.permute.xlu0 %461
        %vm463 = vcmp.lt.s32.totalorder %v410, 15
        %v464 = vsel %vm463, %v460, %v462
        %v465 = vsel %vm463, %v462, %v460
        %v466 = vlaneseq
        %v467 = vshrl.u32 %v466, 7
        %v468 = vsub.s32 2, %v467
        %v469 = vrot.slane %v398, %v468
        %v470 = vlaneseq
        %v471 = vshrl.u32 %v470, 7
        %v472 = vsub.s32 2, %v471
        %v473 = vrot.slane %v399, %v472
        %v474 = vmul.f32 %v465, %v469
        %v475 = vmul.f32 %v464, %v473
        %s476 = sld [smem:[#allocation2 + $0x2]]
        %s477 = sld [smem:[#allocation2 + $0xb]]
        %v478 = vstv %s476
        %v479 = vstv %s477
        %v480 = vsel %vm404, %v478, %v479
        %v481 = vmul.f32 %v480, %v474
        %v482 = vmul.f32 %v480, %v475
        %v483 = vadd.f32 %v457, %v481
        %v484 = vadd.f32 %v458, %v482
        %485 = vrot.lane.b32.xlu0 %v396, 1
        %v486 = vpop.permute.xlu0 %485
        %487 = vrot.lane.b32.xlu0 %v397, 1
        %v488 = vpop.permute.xlu0 %487
        %vm489 = vcmp.lt.s32.totalorder %v410, 1
        %v490 = vsel %vm489, %v486, %v488
        %v491 = vsel %vm489, %v488, %v486
        %v492 = vlaneseq
        %v493 = vshrl.u32 %v492, 7
        %v494 = vsub.s32 3, %v493
        %v495 = vrot.slane %v398, %v494
        %v496 = vlaneseq
        %v497 = vshrl.u32 %v496, 7
        %v498 = vsub.s32 3, %v497
        %v499 = vrot.slane %v399, %v498
        %v500 = vmul.f32 %v491, %v495
        %v501 = vmul.f32 %v490, %v499
        %s502 = sld [smem:[#allocation2 + $0x3]]
        %s503 = sld [smem:[#allocation2 + $0xc]]
        %v504 = vstv %s502
        %v505 = vstv %s503
        %v506 = vsel %vm404, %v504, %v505
        %v507 = vmul.f32 %v506, %v500
        %v508 = vmul.f32 %v506, %v501
        %v509 = vadd.f32 %v483, %v507
        %v510 = vadd.f32 %v484, %v508
        %s511 = sld [smem:[#allocation2 + $0x4]]
        %s512 = sld [smem:[#allocation2 + $0xd]]
        %v513 = vstv %s511
        %v514 = vstv %s512
        %v515 = vsel %vm404, %v513, %v514
        %v516 = vmul.f32 %v515, %v396
        %v517 = vmul.f32 %v515, %v397
        %v518 = vadd.f32 %v509, %v516
        %v519 = vadd.f32 %v510, %v517
        %520 = vrot.lane.b32.xlu0 %v396, 127
        %v521 = vpop.permute.xlu0 %520
        %522 = vrot.lane.b32.xlu0 %v397, 127
        %v523 = vpop.permute.xlu0 %522
        %vm524 = vcmp.lt.s32.totalorder %v410, 127
        %v525 = vsel %vm524, %v521, %v523
        %v526 = vsel %vm524, %v523, %v521
        %v527 = vlaneseq
        %v528 = vshrl.u32 %v527, 7
        %v529 = vsub.s32 5, %v528
        %v530 = vrot.slane %v398, %v529
        %v531 = vlaneseq
        %v532 = vshrl.u32 %v531, 7
        %v533 = vsub.s32 5, %v532
        %v534 = vrot.slane %v399, %v533
        %v535 = vmul.f32 %v525, %v530
        %v536 = vmul.f32 %v526, %v534
        %s537 = sld [smem:[#allocation2 + $0x5]]
        %s538 = sld [smem:[#allocation2 + $0xe]]
        %v539 = vstv %s537
        %v540 = vstv %s538
        %v541 = vsel %vm404, %v539, %v540
        %v542 = vmul.f32 %v541, %v535
        %v543 = vmul.f32 %v541, %v536
        %v544 = vadd.f32 %v518, %v542
        %v545 = vadd.f32 %v519, %v543
        %546 = vrot.lane.b32.xlu0 %v396, 113
        %v547 = vpop.permute.xlu0 %546
        %548 = vrot.lane.b32.xlu0 %v397, 113
        %v549 = vpop.permute.xlu0 %548
        %vm550 = vcmp.lt.s32.totalorder %v410, 113
        %v551 = vsel %vm550, %v547, %v549
        %v552 = vsel %vm550, %v549, %v547
        %v553 = vlaneseq
        %v554 = vshrl.u32 %v553, 7
        %v555 = vsub.s32 6, %v554
        %v556 = vrot.slane %v398, %v555
        %v557 = vlaneseq
        %v558 = vshrl.u32 %v557, 7
        %v559 = vsub.s32 6, %v558
        %v560 = vrot.slane %v399, %v559
        %v561 = vmul.f32 %v551, %v556
        %v562 = vmul.f32 %v552, %v560
        %s563 = sld [smem:[#allocation2 + $0x6]]
        %s564 = sld [smem:[#allocation2 + $0xf]]
        %v565 = vstv %s563
        %v566 = vstv %s564
        %v567 = vsel %vm404, %v565, %v566
        %v568 = vmul.f32 %v567, %v561
        %v569 = vmul.f32 %v567, %v562
        %v570 = vadd.f32 %v544, %v568
        %v571 = vadd.f32 %v545, %v569
        %572 = vrot.lane.b32.xlu0 %v396, 112
        %v573 = vpop.permute.xlu0 %572
        %574 = vrot.lane.b32.xlu0 %v397, 112
        %v575 = vpop.permute.xlu0 %574
        %vm576 = vcmp.lt.s32.totalorder %v410, 112
        %v577 = vsel %vm576, %v573, %v575
        %v578 = vsel %vm576, %v575, %v573
        %v579 = vlaneseq
        %v580 = vshrl.u32 %v579, 7
        %v581 = vsub.s32 7, %v580
        %v582 = vrot.slane %v398, %v581
        %v583 = vlaneseq
        %v584 = vshrl.u32 %v583, 7
        %v585 = vsub.s32 7, %v584
        %v586 = vrot.slane %v399, %v585
        %v587 = vmul.f32 %v577, %v582
        %v588 = vmul.f32 %v578, %v586
        %s589 = sld [smem:[#allocation2 + $0x7]]
        %s590 = sld [smem:[#allocation2 + $0x10]]
        %v591 = vstv %s589
        %v592 = vstv %s590
        %v593 = vsel %vm404, %v591, %v592
        %v594 = vmul.f32 %v593, %v587
        %v595 = vmul.f32 %v593, %v588
        %v596 = vadd.f32 %v570, %v594
        %v597 = vadd.f32 %v571, %v595
        %598 = vrot.lane.b32.xlu0 %v396, 111
        %v599 = vpop.permute.xlu0 %598
        %600 = vrot.lane.b32.xlu0 %v397, 111
        %v601 = vpop.permute.xlu0 %600
        %vm602 = vcmp.lt.s32.totalorder %v410, 111
        %v603 = vsel %vm602, %v599, %v601
        %v604 = vsel %vm602, %v601, %v599
        %v605 = vlaneseq
        %v606 = vshrl.u32 %v605, 7
        %v607 = vsub.s32 0, %v606
        %v608 = vrot.slane %v400, %v607
        %v609 = vlaneseq
        %v610 = vshrl.u32 %v609, 7
        %v611 = vsub.s32 0, %v610
        %v612 = vrot.slane %v401, %v611
        %v613 = vmul.f32 %v603, %v608
        %v614 = vmul.f32 %v604, %v612
        %s615 = sld [smem:[#allocation2 + $0x8]]
        %s616 = sld [smem:[#allocation2 + $0x11]]
        %v617 = vstv %s615
        %v618 = vstv %s616
        %v619 = vsel %vm404, %v617, %v618
        %v620 = vmul.f32 %v619, %v613
        %v621 = vmul.f32 %v619, %v614
        %v622 = vadd.f32 %v596, %v620
        %v623 = vadd.f32 %v597, %v621
        %v626 = vrot.slane %v622, 1
        %v627 = vrot.slane %v623, 1
        %v630 = vadd.f32 %v622, %v626
        %v631 = vadd.f32 %v623, %v627
        %v632 = vxor.u32 %v630, 2147483648
        %v633 = vxor.u32 %v631, 2147483648
        %v634 = vmul.f32 %v632, 1.442695
        %v635 = vpow.pop %v634
        %v636 = vmul.f32 %v633, 1.442695
        %v637 = vpow.pop %v636
        %v638 = vadd.f32 %v635, 1.0
        %v639 = vadd.f32 %v637, 1.0
        %v640 = vrcp.pop %v638
        %v641 = vmul.f32 1.0, %v640
        %v642 = vrcp.pop %v639
        %v643 = vmul.f32 1.0, %v642
        %v644 = vlaneseq
        %v645 = vshrl.u32 %v644, 7
        %v646 = vsub.s32 0, %v645
        %v647 = vrot.slane %v641, %v646
        %v648 = vlaneseq
        %v649 = vshrl.u32 %v648, 7
        %v650 = vsub.s32 0, %v649
        %v651 = vrot.slane %v643, %v650
        %v652 = vmul.f32 %v348, %v647
        %v653 = vmul.f32 %v349, %v651
        %v654 = vmul.f32 %v350, %v647
        %v655 = vmul.f32 %v351, %v651
        %v656 = vmul.f32 %v352, %v647
        %v657 = vmul.f32 %v353, %v651
        %v658 = vmul.f32 %v354, %v647
        %v659 = vmul.f32 %v355, %v651
        %660 = vst [vmem:[%s256] sm:$0xff] %v652
        %661 = vst [vmem:[%s256 + $0x8] sm:$0xff] %v653
        %662 = vst [vmem:[%s256 + $0x10] sm:$0xff] %v654
        %663 = vst [vmem:[%s256 + $0x18] sm:$0xff] %v655
        %664 = vst [vmem:[%s256 + $0x20] sm:$0xff] %v656
        %665 = vst [vmem:[%s256 + $0x28] sm:$0xff] %v657
        %666 = vst [vmem:[%s256 + $0x30] sm:$0xff] %v658
        %667 = vst [vmem:[%s256 + $0x38] sm:$0xff] %v659
        %s668 = sand.u32 %s141, 1
        %s669 = scalar_lea.sflag [#allocation4], %s668
        %s670 = sand.u32 %s141, 1
        %s671 = smul.addr %s670, 64
        %s672 = scalar_lea.vmem [#allocation7], %s671
        // Predicated region
        $region49: #{tpu_custom_call.1} parent=39 // pred_check
          %p673 = pneg %p151
        $region50: #{tpu_custom_call.1} parent=39 // pred_check_branch
          %675 = sbr.rel (%p673) target = $region52
        $region51: #{tpu_custom_call.1} parent=39 // pred_region
          %s677 = ssub.s32 1024, 1024
          %678 = vsyncadd %s669, %s677
          %s679 = smul.addr %s23, 8
          %s680 = smul.addr %s679, 128
          %s681 = scalar_lea.hbm %s5, %s680
          %s682 = sshll.u32 %s672, 4
          %s683 = int_to_ptr.vmem [resolvable:$true] %s682
          %688 = dma.vmem_to_hbm [thread:$0]  %s683, 1024, %s681, %s669, 256, 256, 16
        $region52: #{tpu_custom_call.1} parent=39 // pred_fallthru
          _
      $region40: #{tpu_custom_call.1} parent=5 // pred_fallthru
        _
      %p689 = scmp.le.s32.totalorder 2, %s18
      // Predicated region
      $region53: #{tpu_custom_call.1} parent=5 // pred_check
        %p690 = pneg %p689
      $region54: #{tpu_custom_call.1} parent=5 // pred_check_branch
        %692 = sbr.rel (%p690) target = $region56
      $region55: #{tpu_custom_call.1} parent=5 // pred_region
        %s693 = ssub.s32 %s18, 2
        // Predicated region
        $region57: #{tpu_custom_call.1} parent=55 // pred_check
          %p694 = pneg %p157
        $region58: #{tpu_custom_call.1} parent=55 // pred_check_branch
          %696 = sbr.rel (%p694) target = $region60
        $region59: #{tpu_custom_call.1} parent=55 // pred_region
          %s697 = sand.u32 %s142, 1
          %s698 = scalar_lea.sflag [#allocation4], %s697
          %s699 = sand.u32 %s142, 1
          %s700 = smul.addr %s699, 64
          %s701 = scalar_lea.vmem [#allocation7], %s700
          %702 = dma.done %s698, 1024
        $region60: #{tpu_custom_call.1} parent=55 // pred_fallthru
          _
      $region56: #{tpu_custom_call.1} parent=5 // pred_fallthru
        _
    $region6: #{tpu_custom_call.1} parent=1 // loop_footer
      %s22 = sadd.s32 1, %s18
    $region7: #{tpu_custom_call.1} parent=1 // loop_footer_branch
      %17 = sbr.rel target = $region3
    $region8: #{tpu_custom_call.1} parent=1 // loop_exit
      _
    %703 = vsyncpa [#allocation3], 1
    %s704 = scalar_lea.sflag [#allocation3], 1
    %705 = vsyncpa %s704, 1
    %706 = vsyncpa [#allocation4], 1
    %s707 = scalar_lea.sflag [#allocation4], 1
    %708 = vsyncpa %s707, 1
    %709 = vsyncpa [#allocation5], 1
    %s710 = scalar_lea.sflag [#allocation5], 1
    %711 = vsyncpa %s710, 1

</llo_original>
